<compile_context>
chip_gen: v6e
topology: v6e:2x2x1
jax: 0.10.0
libtpu: 0.0.40
codegen_flags: <defaults>
</compile_context>

<pallas_src>
import jax
import jax.numpy as jnp
from jax.experimental import pallas as pl
from jax.experimental.pallas import tpu as pltpu

# ---------------- module hyper-parameters (from __init__) -------------------
KS = [3, 3, 3, 3, 3, 3, 2]
PS = [1, 1, 1, 1, 1, 1, 0]
SS = [(2, 2), (2, 2), (1, 1), (2, 1), (1, 1), (2, 1), (1, 1)]
NM = [64, 128, 256, 256, 512, 512, 512]
BN = [False, False, True, False, True, False, True]
BN_EPS = 1e-5

COMPUTE_DTYPE = jnp.bfloat16     # MXU input dtype (f32 accumulation inside the kernel)
TM_TARGET = 256                  # M-tile (rows of the patch matrix)


# ---------------------------- Pallas kernel ---------------------------------
def _conv_mm_kernel(p_ref, w_ref, s_ref, t_ref, o_ref):
    # P-tile (tm, K) @ W-tile (K, tn) on the MXU, f32 accumulation.
    acc = jnp.dot(p_ref[...], w_ref[...], preferred_element_type=jnp.float32)
    # Folded (BatchNorm * conv-bias) epilogue in f32, then ReLU (leakyRelu=False).
    y = acc * s_ref[...] + t_ref[...]
    o_ref[...] = jnp.maximum(y, 0.0).astype(o_ref.dtype)


# ------------------------------- glue ---------------------------------------
def _im2col(x_nhwc, kh, kw, sh, sw, ph, pw):
    """Patch matrix [N*Ho*Wo, kh*kw*C] with K ordered (kh, kw, C) -- matches W.reshape."""
    n, h, w, c = x_nhwc.shape
    xp = jnp.pad(x_nhwc, ((0, 0), (ph, ph), (pw, pw), (0, 0)))
    ho = (h + 2 * ph - kh) // sh + 1
    wo = (w + 2 * pw - kw) // sw + 1
    cols = []
    for i in range(kh):
        for j in range(kw):
            cols.append(xp[:, i:i + sh * (ho - 1) + 1:sh,
                           j:j + sw * (wo - 1) + 1:sw, :])
    p = jnp.concatenate(cols, axis=-1)            # [N, Ho, Wo, kh*kw*C]
    return p.reshape(n * ho * wo, kh * kw * c), (n, ho, wo)


def conv_bn_relu_pallas(x_nhwc, w_hwio, bias, scale, shift, stride, pad,
                        out_dtype=COMPUTE_DTYPE):
    kh, kw, cin, cout = w_hwio.shape
    sh, sw = stride

    # Patch matrix in bf16 (halves HBM traffic and the P-tile VMEM footprint).
    patches, (n, ho, wo) = _im2col(x_nhwc.astype(COMPUTE_DTYPE), kh, kw, sh, sw, pad, pad)
    m, k = patches.shape

    # --- output-channel tiling: lane-dense tiles (never masked partial stores) ----
    tn = 256 if cout >= 256 else 128              # 256 fills v6e/v7x 256x256 MXU; 128 is fine on v5e
    cout_pad = ((cout + tn - 1) // tn) * tn       # layer 0: 64 -> 128

    # --- M tiling: bounded VMEM + pipelining, independent of batch*spatial size ---
    tm = TM_TARGET
    m_pad = ((m + 7) // 8) * 8                    # sublane alignment
    if m_pad >= tm:
        m_pad = ((m + tm - 1) // tm) * tm
    else:
        tm = m_pad                                # tiny layers: one full-M tile

    if m_pad != m:
        patches = jnp.pad(patches, ((0, m_pad - m), (0, 0)))

    wm = w_hwio.reshape(k, cout).astype(COMPUTE_DTYPE)
    # Fold conv bias into the BN shift:  (acc + b) * s + t == acc * s + (b * s + t)
    shift_f = bias * scale + shift                # f32
    scale_f = scale                               # f32
    if cout_pad != cout:
        wm = jnp.pad(wm, ((0, 0), (0, cout_pad - cout)))
        scale_f = jnp.pad(scale_f, (0, cout_pad - cout))
        shift_f = jnp.pad(shift_f, (0, cout_pad - cout))

    grid = (m_pad // tm, cout_pad // tn)

    out = pl.pallas_call(
        _conv_mm_kernel,
        out_shape=jax.ShapeDtypeStruct((m_pad, cout_pad), out_dtype),
        grid=grid,
        in_specs=[
            pl.BlockSpec((tm, k), lambda i, j: (i, 0)),    # patch-row tile (full K)
            pl.BlockSpec((k, tn), lambda i, j: (0, j)),    # weight column tile
            pl.BlockSpec((1, tn), lambda i, j: (0, j)),    # folded BN scale (f32)
            pl.BlockSpec((1, tn), lambda i, j: (0, j)),    # folded BN shift + bias (f32)
        ],
        out_specs=pl.BlockSpec((tm, tn), lambda i, j: (i, j)),
        compiler_params=pltpu.CompilerParams(
            dimension_semantics=("parallel", "parallel"),
            vmem_limit_bytes=48 * 1024 * 1024,    # explicit budget; worst tile set ~10 MiB
        ),
    )(patches, wm, scale_f.reshape(1, cout_pad), shift_f.reshape(1, cout_pad))

    out = out[:m, :cout]
    return out.reshape(n, ho, wo, cout)


def cnn_sequence_extractor_pallas(x_nchw, params):
    x = jnp.transpose(x_nchw, (0, 2, 3, 1))            # NCHW -> NHWC
    for p in params:
        x = conv_bn_relu_pallas(x, p["w"], p["b"], p["scale"], p["shift"],
                                p["stride"], p["pad"])
    n, h, w, c = x.shape
    assert h == 1, "the height of conv must be 1"
    x = x[:, 0, :, :]                                  # squeeze(2) -> [N, W, C]
    return jnp.transpose(x, (1, 0, 2)).astype(jnp.float32)   # permute -> [W, N, C]


# ---------------------- deterministic parameter init ------------------------
def init_params(key, nchannels):
    params = []
    cin = nchannels
    for i in range(7):
        k, cout = KS[i], NM[i]
        key, k1, k2, k3, k4, k5, k6 = jax.random.split(key, 7)
        fan_in = k * k * cin
        w = jax.random.normal(k1, (k, k, cin, cout), jnp.float32) / jnp.sqrt(fan_in)
        b = 0.01 * jax.random.normal(k2, (cout,), jnp.float32)
        if BN[i]:
            gamma = 1.0 + 0.1 * jax.random.normal(k3, (cout,), jnp.float32)
            beta = 0.05 * jax.random.normal(k4, (cout,), jnp.float32)
            rmean = 0.05 * jax.random.normal(k5, (cout,), jnp.float32)
            rvar = 1.0 + 0.1 * jax.random.uniform(k6, (cout,), jnp.float32)
            scale = gamma / jnp.sqrt(rvar + BN_EPS)
            shift = beta - rmean * scale
        else:
            scale = jnp.ones((cout,), jnp.float32)
            shift = jnp.zeros((cout,), jnp.float32)
        params.append(dict(w=w, b=b, scale=scale, shift=shift,
                           stride=SS[i], pad=PS[i]))
        cin = cout
    return params


# --------------------------- pure-JAX references ------------------------------
def cnn_sequence_extractor_ref(x_nchw, params, matmul_dtype=jnp.float32):
    """XLA conv reference. matmul_dtype=bf16 reproduces the kernel's mixed precision
    (bf16 inputs, f32 accumulation); matmul_dtype=f32 is the exact PyTorch-f32 math."""
    y = x_nchw
    prec = jax.lax.Precision.HIGHEST if matmul_dtype == jnp.float32 else None
    for p in params:
        w_oihw = jnp.transpose(p["w"], (3, 2, 0, 1)).astype(matmul_dtype)
        out = jax.lax.conv_general_dilated(
            y.astype(matmul_dtype), w_oihw, window_strides=p["stride"],
            padding=[(p["pad"], p["pad"])] * 2,
            dimension_numbers=("NCHW", "OIHW", "NCHW"),
            preferred_element_type=jnp.float32,
            precision=prec)
        out = out + p["b"][None, :, None, None]
        out = out * p["scale"][None, :, None, None] + p["shift"][None, :, None, None]
        y = jnp.maximum(out, 0.0)
    assert y.shape[2] == 1
    y = y[:, :, 0, :]                                  # [N, C, W]
    return jnp.transpose(y, (2, 0, 1))                 # [W, N, C]


# --------------------------------- main --------------------------------------
if __name__ == "__main__":
    key = jax.random.PRNGKey(0)
    kx, kp = jax.random.split(key)

    # Height must be 32 so the conv stack reduces it to exactly 1 (forward asserts h==1).
    N, C, H, W = 2, 4, 32, 16
    x = jax.random.normal(kx, (N, C, H, W), jnp.float32)
    params = init_params(kp, C)

    out = jax.block_until_ready(cnn_sequence_extractor_pallas(x, params))
    ref_mixed = jax.block_until_ready(
        cnn_sequence_extractor_ref(x, params, matmul_dtype=jnp.bfloat16))
    ref_f32 = jax.block_until_ready(
        cnn_sequence_extractor_ref(x, params, matmul_dtype=jnp.float32))

    assert out.shape == ref_f32.shape == (3, N, 512), (out.shape, ref_f32.shape)

    err_mixed = float(jnp.max(jnp.abs(out - ref_mixed)) /
                      (jnp.max(jnp.abs(ref_mixed)) + 1e-6))
    err_f32 = float(jnp.max(jnp.abs(out - ref_f32)) /
                    (jnp.max(jnp.abs(ref_f32)) + 1e-6))

    if err_mixed < 1e-2 and err_f32 < 5e-2:
        print("KERNEL_OK")
    else:
        print(f"MISMATCH err_vs_bf16_ref={err_mixed} err_vs_f32_ref={err_f32}")
</pallas_src>

<mosaic_0001>
module attributes {stable_mosaic.version = 11 : i64} {
  func.func @_conv_mm_kernel(%arg0: i32, %arg1: i32, %arg2: memref<256x36xbf16, #tpu.memory_space<vmem>>, %arg3: memref<36x128xbf16, #tpu.memory_space<vmem>>, %arg4: memref<1x128xf32, #tpu.memory_space<vmem>>, %arg5: memref<1x128xf32, #tpu.memory_space<vmem>>, %arg6: memref<256x128xbf16, #tpu.memory_space<vmem>>) attributes {dimension_semantics = [#tpu.dimension_semantics<parallel>, #tpu.dimension_semantics<parallel>], iteration_bounds = array<i64: 1, 1>, scalar_prefetch = 0 : i64, scratch_operands = 0 : i64, tpu.core_type = #tpu.core_type<tc>, window_params = [{transform_indices = @transform_0, window_bounds = array<i64: 256, 36>}, {transform_indices = @transform_1, window_bounds = array<i64: 36, 128>}, {transform_indices = @transform_2, window_bounds = array<i64: 1, 128>}, {transform_indices = @transform_3, window_bounds = array<i64: 1, 128>}, {transform_indices = @transform_4, window_bounds = array<i64: 256, 128>}]} {
    %c0 = arith.constant 0 : index
    %c0_0 = arith.constant 0 : index
    %0 = vector.load %arg2[%c0, %c0_0] : memref<256x36xbf16, #tpu.memory_space<vmem>>, vector<256x36xbf16>
    %c0_1 = arith.constant 0 : index
    %c0_2 = arith.constant 0 : index
    %1 = vector.load %arg3[%c0_1, %c0_2] : memref<36x128xbf16, #tpu.memory_space<vmem>>, vector<36x128xbf16>
    %cst = arith.constant dense<0.000000e+00> : vector<256x128xf32>
    %2 = tpu.matmul %0, %1, %cst {dimension_numbers = #tpu.dot_dimension_numbers<[1], [0], [0], [1], [0, 0, 1, 1], [], []>} : vector<256x36xbf16>, vector<36x128xbf16>, vector<256x128xf32> -> vector<256x128xf32>
    %c0_3 = arith.constant 0 : index
    %c0_4 = arith.constant 0 : index
    %3 = vector.load %arg4[%c0_3, %c0_4] : memref<1x128xf32, #tpu.memory_space<vmem>>, vector<1x128xf32>
    %4 = vector.broadcast %3 : vector<1x128xf32> to vector<256x128xf32>
    %5 = arith.mulf %2, %4 : vector<256x128xf32>
    %c0_5 = arith.constant 0 : index
    %c0_6 = arith.constant 0 : index
    %6 = vector.load %arg5[%c0_5, %c0_6] : memref<1x128xf32, #tpu.memory_space<vmem>>, vector<1x128xf32>
    %7 = vector.broadcast %6 : vector<1x128xf32> to vector<256x128xf32>
    %8 = arith.addf %5, %7 : vector<256x128xf32>
    %cst_7 = arith.constant 0.000000e+00 : f32
    %9 = vector.broadcast %cst_7 : f32 to vector<256x128xf32>
    %10 = arith.maximumf %8, %9 : vector<256x128xf32>
    %11 = arith.truncf %10 : vector<256x128xf32> to vector<256x128xbf16>
    %c0_8 = arith.constant 0 : index
    %c0_9 = arith.constant 0 : index
    %12 = vector.load %arg6[%c0_8, %c0_9] : memref<256x128xbf16, #tpu.memory_space<vmem>>, vector<256x128xbf16>
    tpu.vector_store %arg6[%c0_8, %c0_9], %11 {strides = array<i32>} : memref<256x128xbf16, #tpu.memory_space<vmem>>, vector<256x128xbf16>,
    return
  }
  func.func @transform_0(%arg0: i32, %arg1: i32) -> (i32, i32) {
    %c0_i32 = arith.constant 0 : i32
    %c0_i32_0 = arith.constant 0 : i32
    return %arg0, %c0_i32 : i32, i32
  }
  func.func @transform_1(%arg0: i32, %arg1: i32) -> (i32, i32) {
    %c0_i32 = arith.constant 0 : i32
    %c0_i32_0 = arith.constant 0 : i32
    return %c0_i32, %arg1 : i32, i32
  }
  func.func @transform_2(%arg0: i32, %arg1: i32) -> (i32, i32) {
    %c0_i32 = arith.constant 0 : i32
    %c0_i32_0 = arith.constant 0 : i32
    return %c0_i32, %arg1 : i32, i32
  }
  func.func @transform_3(%arg0: i32, %arg1: i32) -> (i32, i32) {
    %c0_i32 = arith.constant 0 : i32
    %c0_i32_0 = arith.constant 0 : i32
    return %c0_i32, %arg1 : i32, i32
  }
  func.func @transform_4(%arg0: i32, %arg1: i32) -> (i32, i32) {
    %c0_i32 = arith.constant 0 : i32
    return %arg0, %arg1 : i32, i32
  }
}

</mosaic_0001>

<llo_original>
// kernel: tpu_custom_call.1
$region0: #{tpu_custom_call.1}
  #allocation0 [shape = 'u32[]', space=smem, size = 0x4, offset = 0x4, fixed_abs, tag = 'smem constant byte address 0x4 - core index']
  #allocation1 [shape = 'u32[144,128]{1,0:T(1,128)}', space=vmem, size = 0x12000, scoped, tag = 'internal scratch']
  %s0 = inlined_call_operand.vmem [shape: bf16[256,36], index: 0, kind: input, shape index: {}]
  %s1 = inlined_call_operand.vmem [shape: bf16[36,128], index: 1, kind: input, shape index: {}]
  %s2 = inlined_call_operand.vmem [shape: f32[1,128], index: 2, kind: input, shape index: {}]
  %s3 = inlined_call_operand.vmem [shape: f32[1,128], index: 3, kind: input, shape index: {}]
  %s4 = inlined_call_operand.hbm [shape: bf16[256,128], index: 4, kind: output, shape index: {}]
  %s5 = sld [smem:[#allocation0]]
  $region26: #{tpu_custom_call.1} parent=0
    _
  %s7 = ssub.s32 1, %s5
  %s8 = scalar_select 0, %s7, %s5
  $region1: #{tpu_custom_call.1} parent=0
    #allocation2 [shape = 'u8[65536]{0}', space=vmem, size = 0x10000, scoped, tag = 'output window, operand 0, single buffered']
    #allocation3 [shape = 's32[1]{0}', space=sflag, size = 0x4, scoped, tag = 'scoped memory for tpu_custom_call.1']
    %9 = vsyncpa [#allocation3], 0
    // Predicated region
    $region2: #{tpu_custom_call.1} parent=1 // pred_check
      _
    $region3: #{tpu_custom_call.1} parent=1 // pred_check_branch
      %11 = sbr.rel (0) target = $region5
    $region4: #{tpu_custom_call.1} parent=1 // pred_region
      _
    $region5: #{tpu_custom_call.1} parent=1 // pred_fallthru
      _
    // Predicated region
    $region6: #{tpu_custom_call.1} parent=1 // pred_check
      _
    $region7: #{tpu_custom_call.1} parent=1 // pred_check_branch
      %13 = sbr.rel (0) target = $region9
    $region8: #{tpu_custom_call.1} parent=1 // pred_region
      _
    $region9: #{tpu_custom_call.1} parent=1 // pred_fallthru
      _
    // Predicated region
    $region10: #{tpu_custom_call.1} parent=1 // pred_check
      _
    $region11: #{tpu_custom_call.1} parent=1 // pred_check_branch
      %15 = sbr.rel (0) target = $region13
    $region12: #{tpu_custom_call.1} parent=1 // pred_region
      _
    $region13: #{tpu_custom_call.1} parent=1 // pred_fallthru
      _
    // Predicated region
    $region14: #{tpu_custom_call.1} parent=1 // pred_check
      _
    $region15: #{tpu_custom_call.1} parent=1 // pred_check_branch
      %17 = sbr.rel (0) target = $region17
    $region16: #{tpu_custom_call.1} parent=1 // pred_region
      _
    $region17: #{tpu_custom_call.1} parent=1 // pred_fallthru
      _
    %v19 = vld [vmem:[%s0] sm:$0xf]
    %v20 = vld [vmem:[%s0 + $0x4] sm:$0xf]
    %v21 = vld [vmem:[%s0 + $0x8] sm:$0xf]
    %v22 = vld [vmem:[%s0 + $0xc] sm:$0xf]
    %v23 = vld [vmem:[%s0 + $0x10] sm:$0xf]
    %v24 = vld [vmem:[%s0 + $0x14] sm:$0xf]
    %v25 = vld [vmem:[%s0 + $0x18] sm:$0xf]
    %v26 = vld [vmem:[%s0 + $0x1c] sm:$0xf]
    %v27 = vld [vmem:[%s0 + $0x20] sm:$0xf]
    %v28 = vld [vmem:[%s0 + $0x24] sm:$0xf]
    %v29 = vld [vmem:[%s0 + $0x28] sm:$0xf]
    %v30 = vld [vmem:[%s0 + $0x2c] sm:$0xf]
    %v31 = vld [vmem:[%s0 + $0x30] sm:$0xf]
    %v32 = vld [vmem:[%s0 + $0x34] sm:$0xf]
    %v33 = vld [vmem:[%s0 + $0x38] sm:$0xf]
    %v34 = vld [vmem:[%s0 + $0x3c] sm:$0xf]
    %v35 = vld [vmem:[%s0 + $0x40] sm:$0xf]
    %v36 = vld [vmem:[%s0 + $0x44] sm:$0xf]
    %v37 = vld [vmem:[%s0 + $0x48] sm:$0xf]
    %v38 = vld [vmem:[%s0 + $0x4c] sm:$0xf]
    %v39 = vld [vmem:[%s0 + $0x50] sm:$0xf]
    %v40 = vld [vmem:[%s0 + $0x54] sm:$0xf]
    %v41 = vld [vmem:[%s0 + $0x58] sm:$0xf]
    %v42 = vld [vmem:[%s0 + $0x5c] sm:$0xf]
    %v43 = vld [vmem:[%s0 + $0x60] sm:$0xf]
    %v44 = vld [vmem:[%s0 + $0x64] sm:$0xf]
    %v45 = vld [vmem:[%s0 + $0x68] sm:$0xf]
    %v46 = vld [vmem:[%s0 + $0x6c] sm:$0xf]
    %v47 = vld [vmem:[%s0 + $0x70] sm:$0xf]
    %v48 = vld [vmem:[%s0 + $0x74] sm:$0xf]
    %v49 = vld [vmem:[%s0 + $0x78] sm:$0xf]
    %v50 = vld [vmem:[%s0 + $0x7c] sm:$0xf]
    %v51 = vld [vmem:[%s1] sm:$0xf]
    %v52 = vld [vmem:[%s1 + $0x4] sm:$0xf]
    %v53 = vld [vmem:[%s1 + $0x8] sm:$0xf]
    %v54 = vld [vmem:[%s1 + $0xc] sm:$0xf]
    %v55 = vld [vmem:[%s1 + $0x10] sm:$0x3]
    %v88 = vunpack.c.l.b16 %v19
    %v89 = vunpack.c.l.b16 %v20
    %v90 = vunpack.c.l.b16 %v21
    %v91 = vunpack.c.l.b16 %v22
    %v92 = vunpack.c.l.b16 %v23
    %v93 = vunpack.c.l.b16 %v24
    %v94 = vunpack.c.l.b16 %v25
    %v95 = vunpack.c.l.b16 %v26
    %v96 = vunpack.c.l.b16 %v27
    %v97 = vunpack.c.l.b16 %v28
    %v98 = vunpack.c.l.b16 %v29
    %v99 = vunpack.c.l.b16 %v30
    %v100 = vunpack.c.l.b16 %v31
    %v101 = vunpack.c.l.b16 %v32
    %v102 = vunpack.c.l.b16 %v33
    %v103 = vunpack.c.l.b16 %v34
    %v104 = vunpack.c.l.b16 %v35
    %v105 = vunpack.c.l.b16 %v36
    %v106 = vunpack.c.l.b16 %v37
    %v107 = vunpack.c.l.b16 %v38
    %v108 = vunpack.c.l.b16 %v39
    %v109 = vunpack.c.l.b16 %v40
    %v110 = vunpack.c.l.b16 %v41
    %v111 = vunpack.c.l.b16 %v42
    %v112 = vunpack.c.l.b16 %v43
    %v113 = vunpack.c.l.b16 %v44
    %v114 = vunpack.c.l.b16 %v45
    %v115 = vunpack.c.l.b16 %v46
    %v116 = vunpack.c.l.b16 %v47
    %v117 = vunpack.c.l.b16 %v48
    %v118 = vunpack.c.l.b16 %v49
    %v119 = vunpack.c.l.b16 %v50
    %v120 = vpack.c.b16 %v89, %v88
    %v121 = vpack.c.b16 %v91, %v90
    %v122 = vpack.c.b16 %v93, %v92
    %v123 = vpack.c.b16 %v95, %v94
    %v124 = vpack.c.b16 %v97, %v96
    %v125 = vpack.c.b16 %v99, %v98
    %v126 = vpack.c.b16 %v101, %v100
    %v127 = vpack.c.b16 %v103, %v102
    %v128 = vpack.c.b16 %v105, %v104
    %v129 = vpack.c.b16 %v107, %v106
    %v130 = vpack.c.b16 %v109, %v108
    %v131 = vpack.c.b16 %v111, %v110
    %v132 = vpack.c.b16 %v113, %v112
    %v133 = vpack.c.b16 %v115, %v114
    %v134 = vpack.c.b16 %v117, %v116
    %v135 = vpack.c.b16 %v119, %v118
    %v141 = vunpack.c.l.b16 %v51
    %v142 = vunpack.c.l.b16 %v52
    %v143 = vunpack.c.l.b16 %v53
    %v144 = vunpack.c.l.b16 %v54
    %v145 = vunpack.c.l.b16 %v55
    %v146 = vpack.c.b16 %v142, %v141
    %v147 = vpack.c.b16 %v144, %v143
    %v148 = vpack.c.b16 %v145, %v145
    %vm151 = vcmask 293888
    %v153 = vsel %vm151, %v120, 0
    %v156 = vsel %vm151, %v121, 0
    %v159 = vsel %vm151, %v122, 0
    %v162 = vsel %vm151, %v123, 0
    %v165 = vsel %vm151, %v124, 0
    %v168 = vsel %vm151, %v125, 0
    %v171 = vsel %vm151, %v126, 0
    %v174 = vsel %vm151, %v127, 0
    %v177 = vsel %vm151, %v128, 0
    %v180 = vsel %vm151, %v129, 0
    %v183 = vsel %vm151, %v130, 0
    %v186 = vsel %vm151, %v131, 0
    %v189 = vsel %vm151, %v132, 0
    %v192 = vsel %vm151, %v133, 0
    %v195 = vsel %vm151, %v134, 0
    %v198 = vsel %vm151, %v135, 0
    %vm200 = vcmask 1041408
    %v202 = vsel %vm200, %v148, 0
    %204 = vmatprep.subr.bf16.mxu0 0
    %205 = vmatpush1.bf16.msra.mxu0 0
    %206 = vmatprep.subr.bf16.mxu0 0
    %207 = vmatpush1.bf16.msra.mxu0 0
    %208 = vmatprep.subr.bf16.mxu0 0
    %209 = vmatpush1.bf16.msra.mxu0 0
    %210 = vmatprep.subr.bf16.mxu0 0
    %211 = vmatpush1.bf16.msra.mxu0 0
    %212 = vmatprep.subr.bf16.mxu0 0
    %213 = vmatpush1.bf16.msra.mxu0 0
    %214 = vmatprep.subr.bf16.mxu0 0
    %215 = vmatpush1.bf16.msra.mxu0 %v202
    %216 = vmatprep.subr.bf16.mxu0 0
    %217 = vmatpush1.bf16.msra.mxu0 %v147
    %218 = vmatprep.subr.bf16.mxu0 0
    %219 = vmatpush1.bf16.msra.mxu0 %v146
    %220 = vmatprep.subr.bf16.mxu0 0
    %221 = vmatpush2.bf16.msra.mxu0 0
    %222 = vmatprep.subr.bf16.mxu0 0
    %223 = vmatpush2.bf16.msra.mxu0 0
    %224 = vmatprep.subr.bf16.mxu0 0
    %225 = vmatpush2.bf16.msra.mxu0 0
    %226 = vmatprep.subr.bf16.mxu0 0
    %227 = vmatpush2.bf16.msra.mxu0 0
    %228 = vmatprep.subr.bf16.mxu0 0
    %229 = vmatpush2.bf16.msra.mxu0 0
    %230 = vmatprep.subr.bf16.mxu0 0
    %231 = vmatpush2.bf16.msra.mxu0 0
    %232 = vmatprep.subr.bf16.mxu0 0
    %233 = vmatpush2.bf16.msra.mxu0 0
    %234 = vmatprep.subr.bf16.mxu0 0
    %235 = vmatpush2.bf16.msra.mxu0 0
    %236 = vmatprep.mubr.bf16.mxu0 0
    %237 = vmatmul.mubr.bf16.gmra.mxu0 %v153
    %v238 = vpop.f32.mrf.mxu0
    %v239 = vadd.f32 0.0, %v238
    %v240 = vpop.f32.mrf.mxu0
    %v241 = vpop.f32.mrf.mxu0
    %v242 = vadd.f32 0.0, %v241
    %v243 = vpop.f32.mrf.mxu0
    %244 = vmatprep.mubr.bf16.mxu0 0
    %245 = vmatmul.mubr.bf16.gmra.mxu0 %v156
    %v246 = vpop.f32.mrf.mxu0
    %v247 = vadd.f32 0.0, %v246
    %v248 = vpop.f32.mrf.mxu0
    %v249 = vpop.f32.mrf.mxu0
    %v250 = vadd.f32 0.0, %v249
    %v251 = vpop.f32.mrf.mxu0
    %252 = vmatprep.mubr.bf16.mxu0 0
    %253 = vmatmul.mubr.bf16.gmra.mxu0 %v159
    %v254 = vpop.f32.mrf.mxu0
    %v255 = vadd.f32 0.0, %v254
    %v256 = vpop.f32.mrf.mxu0
    %v257 = vpop.f32.mrf.mxu0
    %v258 = vadd.f32 0.0, %v257
    %v259 = vpop.f32.mrf.mxu0
    %260 = vmatprep.mubr.bf16.mxu0 0
    %261 = vmatmul.mubr.bf16.gmra.mxu0 %v162
    %v262 = vpop.f32.mrf.mxu0
    %v263 = vadd.f32 0.0, %v262
    %v264 = vpop.f32.mrf.mxu0
    %v265 = vpop.f32.mrf.mxu0
    %v266 = vadd.f32 0.0, %v265
    %v267 = vpop.f32.mrf.mxu0
    %268 = vmatprep.mubr.bf16.mxu0 0
    %269 = vmatmul.mubr.bf16.gmra.mxu0 %v165
    %v270 = vpop.f32.mrf.mxu0
    %v271 = vadd.f32 0.0, %v270
    %v272 = vpop.f32.mrf.mxu0
    %v273 = vpop.f32.mrf.mxu0
    %v274 = vadd.f32 0.0, %v273
    %v275 = vpop.f32.mrf.mxu0
    %276 = vmatprep.mubr.bf16.mxu0 0
    %277 = vmatmul.mubr.bf16.gmra.mxu0 %v168
    %v278 = vpop.f32.mrf.mxu0
    %v279 = vadd.f32 0.0, %v278
    %v280 = vpop.f32.mrf.mxu0
    %v281 = vpop.f32.mrf.mxu0
    %v282 = vadd.f32 0.0, %v281
    %v283 = vpop.f32.mrf.mxu0
    %284 = vmatprep.mubr.bf16.mxu0 0
    %285 = vmatmul.mubr.bf16.gmra.mxu0 %v171
    %v286 = vpop.f32.mrf.mxu0
    %v287 = vadd.f32 0.0, %v286
    %v288 = vpop.f32.mrf.mxu0
    %v289 = vpop.f32.mrf.mxu0
    %v290 = vadd.f32 0.0, %v289
    %v291 = vpop.f32.mrf.mxu0
    %292 = vmatprep.mubr.bf16.mxu0 0
    %293 = vmatmul.mubr.bf16.gmra.mxu0 %v174
    %v294 = vpop.f32.mrf.mxu0
    %v295 = vadd.f32 0.0, %v294
    %v296 = vpop.f32.mrf.mxu0
    %v297 = vpop.f32.mrf.mxu0
    %v298 = vadd.f32 0.0, %v297
    %v299 = vpop.f32.mrf.mxu0
    %300 = vmatprep.mubr.bf16.mxu0 0
    %301 = vmatmul.mubr.bf16.gmra.mxu0 %v177
    %v302 = vpop.f32.mrf.mxu0
    %v303 = vadd.f32 0.0, %v302
    %v304 = vpop.f32.mrf.mxu0
    %v305 = vpop.f32.mrf.mxu0
    %v306 = vadd.f32 0.0, %v305
    %v307 = vpop.f32.mrf.mxu0
    %308 = vmatprep.mubr.bf16.mxu0 0
    %309 = vmatmul.mubr.bf16.gmra.mxu0 %v180
    %v310 = vpop.f32.mrf.mxu0
    %v311 = vadd.f32 0.0, %v310
    %v312 = vpop.f32.mrf.mxu0
    %v313 = vpop.f32.mrf.mxu0
    %v314 = vadd.f32 0.0, %v313
    %v315 = vpop.f32.mrf.mxu0
    %316 = vmatprep.mubr.bf16.mxu0 0
    %317 = vmatmul.mubr.bf16.gmra.mxu0 %v183
    %v318 = vpop.f32.mrf.mxu0
    %v319 = vadd.f32 0.0, %v318
    %v320 = vpop.f32.mrf.mxu0
    %v321 = vpop.f32.mrf.mxu0
    %v322 = vadd.f32 0.0, %v321
    %v323 = vpop.f32.mrf.mxu0
    %324 = vmatprep.mubr.bf16.mxu0 0
    %325 = vmatmul.mubr.bf16.gmra.mxu0 %v186
    %v326 = vpop.f32.mrf.mxu0
    %v327 = vadd.f32 0.0, %v326
    %v328 = vpop.f32.mrf.mxu0
    %v329 = vpop.f32.mrf.mxu0
    %v330 = vadd.f32 0.0, %v329
    %v331 = vpop.f32.mrf.mxu0
    %332 = vmatprep.mubr.bf16.mxu0 0
    %333 = vmatmul.mubr.bf16.gmra.mxu0 %v189
    %v334 = vpop.f32.mrf.mxu0
    %v335 = vadd.f32 0.0, %v334
    %v336 = vpop.f32.mrf.mxu0
    %v337 = vpop.f32.mrf.mxu0
    %v338 = vadd.f32 0.0, %v337
    %v339 = vpop.f32.mrf.mxu0
    %340 = vmatprep.mubr.bf16.mxu0 0
    %341 = vmatmul.mubr.bf16.gmra.mxu0 %v192
    %v342 = vpop.f32.mrf.mxu0
    %v343 = vadd.f32 0.0, %v342
    %v344 = vpop.f32.mrf.mxu0
    %v345 = vpop.f32.mrf.mxu0
    %v346 = vadd.f32 0.0, %v345
    %v347 = vpop.f32.mrf.mxu0
    %348 = vmatprep.mubr.bf16.mxu0 0
    %349 = vmatmul.mubr.bf16.gmra.mxu0 %v195
    %v350 = vpop.f32.mrf.mxu0
    %v351 = vadd.f32 0.0, %v350
    %v352 = vpop.f32.mrf.mxu0
    %v353 = vpop.f32.mrf.mxu0
    %v354 = vadd.f32 0.0, %v353
    %v355 = vpop.f32.mrf.mxu0
    %356 = vmatprep.mubr.bf16.mxu0 0
    %357 = vmatmul.mubr.bf16.gmra.mxu0 %v198
    %v358 = vpop.f32.mrf.mxu0
    %v359 = vadd.f32 0.0, %v358
    %v360 = vpop.f32.mrf.mxu0
    %v361 = vpop.f32.mrf.mxu0
    %v362 = vadd.f32 0.0, %v361
    %v363 = vpop.f32.mrf.mxu0
    %364 = vdwg.mxu0
    %v365 = vld [vmem:[%s2] sm:$0x1]
    %v367 = vlaneseq
    %v368 = vshrl.u32 %v367, 7
    %v369 = vsub.s32 0, %v368
    %v370 = vrot.slane %v365, %v369
    %v372 = vmul.f32 %v239, %v370
    %v373 = vmul.f32 %v242, %v370
    %v374 = vmul.f32 %v247, %v370
    %v375 = vmul.f32 %v250, %v370
    %v376 = vmul.f32 %v255, %v370
    %v377 = vmul.f32 %v258, %v370
    %v378 = vmul.f32 %v263, %v370
    %v379 = vmul.f32 %v266, %v370
    %v380 = vmul.f32 %v271, %v370
    %v381 = vmul.f32 %v274, %v370
    %v382 = vmul.f32 %v279, %v370
    %v383 = vmul.f32 %v282, %v370
    %v384 = vmul.f32 %v287, %v370
    %v385 = vmul.f32 %v290, %v370
    %v386 = vmul.f32 %v295, %v370
    %v387 = vmul.f32 %v298, %v370
    %v388 = vmul.f32 %v303, %v370
    %v389 = vmul.f32 %v306, %v370
    %v390 = vmul.f32 %v311, %v370
    %v391 = vmul.f32 %v314, %v370
    %v392 = vmul.f32 %v319, %v370
    %v393 = vmul.f32 %v322, %v370
    %v394 = vmul.f32 %v327, %v370
    %v395 = vmul.f32 %v330, %v370
    %v396 = vmul.f32 %v335, %v370
    %v397 = vmul.f32 %v338, %v370
    %v398 = vmul.f32 %v343, %v370
    %v399 = vmul.f32 %v346, %v370
    %v400 = vmul.f32 %v351, %v370
    %v401 = vmul.f32 %v354, %v370
    %v402 = vmul.f32 %v359, %v370
    %v403 = vmul.f32 %v362, %v370
    %v404 = vld [vmem:[%s3] sm:$0x1]
    %v406 = vlaneseq
    %v407 = vshrl.u32 %v406, 7
    %v408 = vsub.s32 0, %v407
    %v409 = vrot.slane %v404, %v408
    %v411 = vadd.f32 %v372, %v409
    %v412 = vadd.f32 %v373, %v409
    %v413 = vadd.f32 %v374, %v409
    %v414 = vadd.f32 %v375, %v409
    %v415 = vadd.f32 %v376, %v409
    %v416 = vadd.f32 %v377, %v409
    %v417 = vadd.f32 %v378, %v409
    %v418 = vadd.f32 %v379, %v409
    %v419 = vadd.f32 %v380, %v409
    %v420 = vadd.f32 %v381, %v409
    %v421 = vadd.f32 %v382, %v409
    %v422 = vadd.f32 %v383, %v409
    %v423 = vadd.f32 %v384, %v409
    %v424 = vadd.f32 %v385, %v409
    %v425 = vadd.f32 %v386, %v409
    %v426 = vadd.f32 %v387, %v409
    %v427 = vadd.f32 %v388, %v409
    %v428 = vadd.f32 %v389, %v409
    %v429 = vadd.f32 %v390, %v409
    %v430 = vadd.f32 %v391, %v409
    %v431 = vadd.f32 %v392, %v409
    %v432 = vadd.f32 %v393, %v409
    %v433 = vadd.f32 %v394, %v409
    %v434 = vadd.f32 %v395, %v409
    %v435 = vadd.f32 %v396, %v409
    %v436 = vadd.f32 %v397, %v409
    %v437 = vadd.f32 %v398, %v409
    %v438 = vadd.f32 %v399, %v409
    %v439 = vadd.f32 %v400, %v409
    %v440 = vadd.f32 %v401, %v409
    %v441 = vadd.f32 %v402, %v409
    %v442 = vadd.f32 %v403, %v409
    %v443 = vmax.f32 %v411, 0.0
    %v444 = vmax.f32 %v412, 0.0
    %v445 = vmax.f32 %v413, 0.0
    %v446 = vmax.f32 %v414, 0.0
    %v447 = vmax.f32 %v415, 0.0
    %v448 = vmax.f32 %v416, 0.0
    %v449 = vmax.f32 %v417, 0.0
    %v450 = vmax.f32 %v418, 0.0
    %v451 = vmax.f32 %v419, 0.0
    %v452 = vmax.f32 %v420, 0.0
    %v453 = vmax.f32 %v421, 0.0
    %v454 = vmax.f32 %v422, 0.0
    %v455 = vmax.f32 %v423, 0.0
    %v456 = vmax.f32 %v424, 0.0
    %v457 = vmax.f32 %v425, 0.0
    %v458 = vmax.f32 %v426, 0.0
    %v459 = vmax.f32 %v427, 0.0
    %v460 = vmax.f32 %v428, 0.0
    %v461 = vmax.f32 %v429, 0.0
    %v462 = vmax.f32 %v430, 0.0
    %v463 = vmax.f32 %v431, 0.0
    %v464 = vmax.f32 %v432, 0.0
    %v465 = vmax.f32 %v433, 0.0
    %v466 = vmax.f32 %v434, 0.0
    %v467 = vmax.f32 %v435, 0.0
    %v468 = vmax.f32 %v436, 0.0
    %v469 = vmax.f32 %v437, 0.0
    %v470 = vmax.f32 %v438, 0.0
    %v471 = vmax.f32 %v439, 0.0
    %v472 = vmax.f32 %v440, 0.0
    %v473 = vmax.f32 %v441, 0.0
    %v474 = vmax.f32 %v442, 0.0
    %v475 = vpack.c.bf16 %v444, %v443
    %v476 = vpack.c.bf16 %v446, %v445
    %v477 = vpack.c.bf16 %v448, %v447
    %v478 = vpack.c.bf16 %v450, %v449
    %v479 = vpack.c.bf16 %v452, %v451
    %v480 = vpack.c.bf16 %v454, %v453
    %v481 = vpack.c.bf16 %v456, %v455
    %v482 = vpack.c.bf16 %v458, %v457
    %v483 = vpack.c.bf16 %v460, %v459
    %v484 = vpack.c.bf16 %v462, %v461
    %v485 = vpack.c.bf16 %v464, %v463
    %v486 = vpack.c.bf16 %v466, %v465
    %v487 = vpack.c.bf16 %v468, %v467
    %v488 = vpack.c.bf16 %v470, %v469
    %v489 = vpack.c.bf16 %v472, %v471
    %v490 = vpack.c.bf16 %v474, %v473
    %v507 = vunpack.c.l.b16 %v475
    %v508 = vunpack.c.h.b16 %v475
    %v509 = vunpack.c.l.b16 %v476
    %v510 = vunpack.c.h.b16 %v476
    %v511 = vunpack.c.l.b16 %v477
    %v512 = vunpack.c.h.b16 %v477
    %v513 = vunpack.c.l.b16 %v478
    %v514 = vunpack.c.h.b16 %v478
    %v515 = vunpack.c.l.b16 %v479
    %v516 = vunpack.c.h.b16 %v479
    %v517 = vunpack.c.l.b16 %v480
    %v518 = vunpack.c.h.b16 %v480
    %v519 = vunpack.c.l.b16 %v481
    %v520 = vunpack.c.h.b16 %v481
    %v521 = vunpack.c.l.b16 %v482
    %v522 = vunpack.c.h.b16 %v482
    %v523 = vunpack.c.l.b16 %v483
    %v524 = vunpack.c.h.b16 %v483
    %v525 = vunpack.c.l.b16 %v484
    %v526 = vunpack.c.h.b16 %v484
    %v527 = vunpack.c.l.b16 %v485
    %v528 = vunpack.c.h.b16 %v485
    %v529 = vunpack.c.l.b16 %v486
    %v530 = vunpack.c.h.b16 %v486
    %v531 = vunpack.c.l.b16 %v487
    %v532 = vunpack.c.h.b16 %v487
    %v533 = vunpack.c.l.b16 %v488
    %v534 = vunpack.c.h.b16 %v488
    %v535 = vunpack.c.l.b16 %v489
    %v536 = vunpack.c.h.b16 %v489
    %v537 = vunpack.c.l.b16 %v490
    %v538 = vunpack.c.h.b16 %v490
    %v539 = vpack.c.b16 %v507, %v507
    %v540 = vpack.c.b16 %v508, %v508
    %v541 = vpack.c.b16 %v509, %v509
    %v542 = vpack.c.b16 %v510, %v510
    %v543 = vpack.c.b16 %v511, %v511
    %v544 = vpack.c.b16 %v512, %v512
    %v545 = vpack.c.b16 %v513, %v513
    %v546 = vpack.c.b16 %v514, %v514
    %v547 = vpack.c.b16 %v515, %v515
    %v548 = vpack.c.b16 %v516, %v516
    %v549 = vpack.c.b16 %v517, %v517
    %v550 = vpack.c.b16 %v518, %v518
    %v551 = vpack.c.b16 %v519, %v519
    %v552 = vpack.c.b16 %v520, %v520
    %v553 = vpack.c.b16 %v521, %v521
    %v554 = vpack.c.b16 %v522, %v522
    %v555 = vpack.c.b16 %v523, %v523
    %v556 = vpack.c.b16 %v524, %v524
    %v557 = vpack.c.b16 %v525, %v525
    %v558 = vpack.c.b16 %v526, %v526
    %v559 = vpack.c.b16 %v527, %v527
    %v560 = vpack.c.b16 %v528, %v528
    %v561 = vpack.c.b16 %v529, %v529
    %v562 = vpack.c.b16 %v530, %v530
    %v563 = vpack.c.b16 %v531, %v531
    %v564 = vpack.c.b16 %v532, %v532
    %v565 = vpack.c.b16 %v533, %v533
    %v566 = vpack.c.b16 %v534, %v534
    %v567 = vpack.c.b16 %v535, %v535
    %v568 = vpack.c.b16 %v536, %v536
    %v569 = vpack.c.b16 %v537, %v537
    %v570 = vpack.c.b16 %v538, %v538
    %603 = vst [vmem:[#allocation2] sm:$0xf] %v539
    %604 = vst [vmem:[#allocation2 + $0x4] sm:$0xf] %v540
    %605 = vst [vmem:[#allocation2 + $0x8] sm:$0xf] %v541
    %606 = vst [vmem:[#allocation2 + $0xc] sm:$0xf] %v542
    %607 = vst [vmem:[#allocation2 + $0x10] sm:$0xf] %v543
    %608 = vst [vmem:[#allocation2 + $0x14] sm:$0xf] %v544
    %609 = vst [vmem:[#allocation2 + $0x18] sm:$0xf] %v545
    %610 = vst [vmem:[#allocation2 + $0x1c] sm:$0xf] %v546
    %611 = vst [vmem:[#allocation2 + $0x20] sm:$0xf] %v547
    %612 = vst [vmem:[#allocation2 + $0x24] sm:$0xf] %v548
    %613 = vst [vmem:[#allocation2 + $0x28] sm:$0xf] %v549
    %614 = vst [vmem:[#allocation2 + $0x2c] sm:$0xf] %v550
    %615 = vst [vmem:[#allocation2 + $0x30] sm:$0xf] %v551
    %616 = vst [vmem:[#allocation2 + $0x34] sm:$0xf] %v552
    %617 = vst [vmem:[#allocation2 + $0x38] sm:$0xf] %v553
    %618 = vst [vmem:[#allocation2 + $0x3c] sm:$0xf] %v554
    %619 = vst [vmem:[#allocation2 + $0x40] sm:$0xf] %v555
    %620 = vst [vmem:[#allocation2 + $0x44] sm:$0xf] %v556
    %621 = vst [vmem:[#allocation2 + $0x48] sm:$0xf] %v557
    %622 = vst [vmem:[#allocation2 + $0x4c] sm:$0xf] %v558
    %623 = vst [vmem:[#allocation2 + $0x50] sm:$0xf] %v559
    %624 = vst [vmem:[#allocation2 + $0x54] sm:$0xf] %v560
    %625 = vst [vmem:[#allocation2 + $0x58] sm:$0xf] %v561
    %626 = vst [vmem:[#allocation2 + $0x5c] sm:$0xf] %v562
    %627 = vst [vmem:[#allocation2 + $0x60] sm:$0xf] %v563
    %628 = vst [vmem:[#allocation2 + $0x64] sm:$0xf] %v564
    %629 = vst [vmem:[#allocation2 + $0x68] sm:$0xf] %v565
    %630 = vst [vmem:[#allocation2 + $0x6c] sm:$0xf] %v566
    %631 = vst [vmem:[#allocation2 + $0x70] sm:$0xf] %v567
    %632 = vst [vmem:[#allocation2 + $0x74] sm:$0xf] %v568
    %633 = vst [vmem:[#allocation2 + $0x78] sm:$0xf] %v569
    %634 = vst [vmem:[#allocation2 + $0x7c] sm:$0xf] %v570
    // Predicated region
    $region18: #{tpu_custom_call.1} parent=1 // pred_check
      _
    $region19: #{tpu_custom_call.1} parent=1 // pred_check_branch
      %636 = sbr.rel (0) target = $region21
    $region20: #{tpu_custom_call.1} parent=1 // pred_region
      %s638 = ssub.s32 2048, 2048
      %639 = vsyncadd [#allocation3], %s638
      %s640 = sshll.u32 [#allocation2], 4
      %s641 = int_to_ptr.vmem [resolvable:$true] %s640
      %646 = dma.vmem_to_hbm [thread:$0]  %s641, 2048, %s4, [#allocation3], 64, 64, 4
    $region21: #{tpu_custom_call.1} parent=1 // pred_fallthru
      _
    // Predicated region
    $region22: #{tpu_custom_call.1} parent=1 // pred_check
      _
    $region23: #{tpu_custom_call.1} parent=1 // pred_check_branch
      %648 = sbr.rel (0) target = $region25
    $region24: #{tpu_custom_call.1} parent=1 // pred_region
      %649 = dma.done [#allocation3], 2048
    $region25: #{tpu_custom_call.1} parent=1 // pred_fallthru
      _
    %650 = vsyncpa [#allocation3], 1

</llo_original>
